<compile_context>
chip_gen: v7x
topology: tpu7x:2x2x1
jax: 0.10.0
libtpu: 0.0.40
codegen_flags: <defaults>
</compile_context>

<pallas_src>
import functools

import jax
import jax.numpy as jnp
from jax.experimental import pallas as pl
from jax.experimental.pallas import tpu as pltpu


def _round_up(x, m):
    return (x + m - 1) // m * m


def _se_kernel(x_ref, w1_ref, b1_ref, w2_ref, o_ref, *, inv_hw):
    # --- squeeze: global average pool over the (padded) spatial lane axis ----
    # Zero-padded lanes/channels contribute 0 to the sum; divide by true H*W.
    pooled = jnp.sum(x_ref[...], axis=-1).astype(jnp.float32) * inv_hw   # (bn, Cp)

    # --- excite MLP: (C -> E) with folded BN + ReLU, then (E -> C) -----------
    # The MLP is microscopic; f32 default-precision dots keep full accuracy and
    # sit entirely off the HBM roofline.
    h = jnp.dot(pooled, w1_ref[...], preferred_element_type=jnp.float32)  # (bn, E)
    h = jnp.maximum(h + b1_ref[...], 0.0)                                 # bias+ReLU
    y = jnp.dot(h, w2_ref[...], preferred_element_type=jnp.float32)       # (bn, Cp)

    # --- hard-sigmoid: relu6(y + 3) * (1/6)  (constant mul, no divide) -------
    scale = jnp.clip(y + 3.0, 0.0, 6.0) * (1.0 / 6.0)                     # (bn, Cp)

    # --- excite: broadcast per-channel scale over the resident x tile --------
    # Re-read x_ref at point of use so the big tile isn't kept live across the MLP.
    o_ref[...] = (x_ref[...] * scale[:, :, None].astype(x_ref.dtype)
                  ).astype(o_ref.dtype)


def _vmem_limits():
    """(physical VMEM bytes, scoped limit to request) — generation aware."""
    try:
        phys = int(pltpu.get_tpu_info().vmem_capacity_bytes)
    except Exception:
        phys = 64 << 20          # be conservative (v7x has 64 MiB per TC)
    limit = min(int(phys * 3 // 4), 96 << 20)   # leave headroom below physical
    return phys, limit


def _pick_batch_tile(n, c_pad, hw_pad, itemsize, budget_bytes, min_steps=4):
    """Batch-tile bn (a divisor of n).

    Preference order: fits the VMEM budget, then grid depth >= min_steps (so
    DMA-in / compute / writeback pipeline), then an even grid length (balances
    v7x's 2 TensorCores on the parallel axis), then the largest tile.
    """
    per_sample = c_pad * hw_pad * itemsize
    divisors = [d for d in range(1, n + 1) if n % d == 0]
    fitting = [d for d in divisors if d * per_sample <= budget_bytes]
    if not fitting:
        # TODO(synk): a single (1, Cp, HWp) sample exceeds the budget; add a
        # two-pass spatial tiling (pool pass, then excite pass) for that case.
        return 1

    def score(bn):
        steps = n // bn
        return (steps >= min_steps, steps % 2 == 0, bn)

    return max(fitting, key=score)


def se_module_forward(x, w1, bn_gamma, bn_beta, bn_mean, bn_var, w2,
                      *, eps=1e-5, block_n=None, donate_input=False):
    """Pallas SeModule.forward.

    x : (N, C, H, W)
    w1: (E, C, 1, 1)   Conv2d(C, E, 1, bias=False) weight
    w2: (C, E, 1, 1)   Conv2d(E, C, 1, bias=False) weight
    bn_*: (E,)         BatchNorm2d(E) parameters / running stats
    """
    N, C, H, W = x.shape
    E = w1.shape[0]
    HW = H * W
    itemsize = jnp.dtype(x.dtype).itemsize

    # Dense-tile targets: lanes (last dim) multiple of 128, sublanes
    # (second-to-last dim) multiple of the dtype's sublane tile.
    sublane = max(8, 32 // itemsize)            # 8 f32, 16 bf16, 32 int8
    HWp = _round_up(HW, 128)
    Cp = _round_up(C, sublane)

    # --- fold eval-mode BatchNorm into the first 1x1 conv --------------------
    #   BN(conv(p)) = (W1 @ p) * s + b,  s = gamma * rsqrt(var + eps),
    #                                    b = beta - mean * s
    s = bn_gamma.astype(jnp.float32) * jax.lax.rsqrt(
        bn_var.astype(jnp.float32) + eps)
    w1_folded = (w1[:, :, 0, 0].astype(jnp.float32) * s[:, None]).T       # (C, E)
    b1 = (bn_beta.astype(jnp.float32)
          - bn_mean.astype(jnp.float32) * s).reshape(1, E)                # (1, E)
    w2_mat = w2[:, :, 0, 0].astype(jnp.float32).T                         # (E, C)
    if Cp != C:
        # Padded channels: zero weight rows contribute nothing to the MLP and
        # their scale only multiplies zero-padded x rows (sliced off below).
        w1_folded = jnp.pad(w1_folded, ((0, Cp - C), (0, 0)))             # (Cp, E)
        w2_mat = jnp.pad(w2_mat, ((0, 0), (0, Cp - C)))                   # (E, Cp)

    # --- lane/sublane-dense layout of x --------------------------------------
    x3 = x.reshape(N, C, HW)
    if Cp != C or HWp != HW:
        x3 = jnp.pad(x3, ((0, 0), (0, Cp - C), (0, HWp - HW)))

    _, vmem_limit = _vmem_limits()
    # in + out tiles, each double-buffered, plus weights -> ~1/6 of the limit,
    # capped at 4 MiB (HBM roofline already saturates at 512-1024-wide tiles).
    tile_budget = min(4 << 20, vmem_limit // 6)
    bn = block_n if block_n is not None else _pick_batch_tile(
        N, Cp, HWp, itemsize, tile_budget)
    assert N % bn == 0, "batch-tile must divide N"

    out = pl.pallas_call(
        functools.partial(_se_kernel, inv_hw=1.0 / float(HW)),
        out_shape=jax.ShapeDtypeStruct((N, Cp, HWp), x.dtype),
        grid=(N // bn,),
        in_specs=[
            pl.BlockSpec((bn, Cp, HWp), lambda i: (i, 0, 0)),   # x batch-tile
            pl.BlockSpec((Cp, E), lambda i: (0, 0)),            # folded W1
            pl.BlockSpec((1, E), lambda i: (0, 0)),             # folded BN bias
            pl.BlockSpec((E, Cp), lambda i: (0, 0)),            # W2
        ],
        out_specs=pl.BlockSpec((bn, Cp, HWp), lambda i: (i, 0, 0)),
        compiler_params=pltpu.CompilerParams(
            dimension_semantics=("parallel",),
            vmem_limit_bytes=vmem_limit,
        ),
        cost_estimate=pl.CostEstimate(
            flops=2 * N * (Cp * E + E * Cp) + 2 * N * Cp * HWp,
            transcendentals=0,
            bytes_accessed=2 * N * Cp * HWp * itemsize,
        ),
        # Alias x's (padded) buffer onto the output when the caller no longer
        # needs x (avoids allocating a second N*Cp*HWp HBM buffer).
        input_output_aliases=({0: 0} if donate_input else {}),
    )(x3, w1_folded, b1, w2_mat)

    if Cp != C or HWp != HW:
        out = out[:, :C, :HW]
    return out.reshape(N, C, H, W)


def _se_reference(x, w1, bn_gamma, bn_beta, bn_mean, bn_var, w2, eps=1e-5):
    """Pure-jnp reference mirroring the PyTorch SeModule (eval-mode BN)."""
    pooled = x.mean(axis=(2, 3))                                   # (N, C)
    h = pooled @ w1[:, :, 0, 0].T                                  # (N, E)
    h = (h - bn_mean) * (bn_gamma / jnp.sqrt(bn_var + eps)) + bn_beta
    h = jnp.maximum(h, 0.0)
    y = h @ w2[:, :, 0, 0].T                                       # (N, C)
    scale = jnp.clip(y + 3.0, 0.0, 6.0) / 6.0
    return x * scale[:, :, None, None]


if __name__ == "__main__":
    key = jax.random.PRNGKey(0)
    k_x, k_w1, k_w2, k_g, k_b, k_m, k_v = jax.random.split(key, 7)

    # SeModule(in_size=4, reduction=4) -> expand_size = max(4 // 4, 8) = 8.
    # N=8 exercises the multi-step, evenly-sharded grid (bn=2 -> grid=(4,)).
    N, C, H, W = 8, 4, 16, 16
    E = max(C // 4, 8)

    x = jax.random.normal(k_x, (N, C, H, W), dtype=jnp.float32)
    w1 = jax.random.normal(k_w1, (E, C, 1, 1), dtype=jnp.float32) * 0.5
    w2 = jax.random.normal(k_w2, (C, E, 1, 1), dtype=jnp.float32) * 0.5
    bn_gamma = jax.random.uniform(k_g, (E,), minval=0.5, maxval=1.5,
                                  dtype=jnp.float32)
    bn_beta = jax.random.normal(k_b, (E,), dtype=jnp.float32) * 0.1
    bn_mean = jax.random.normal(k_m, (E,), dtype=jnp.float32) * 0.1
    bn_var = jax.random.uniform(k_v, (E,), minval=0.5, maxval=1.5,
                                dtype=jnp.float32)

    y = se_module_forward(x, w1, bn_gamma, bn_beta, bn_mean, bn_var, w2)
    y = jax.block_until_ready(y)

    y_ref = _se_reference(x, w1, bn_gamma, bn_beta, bn_mean, bn_var, w2)
    assert y.shape == x.shape and y.dtype == x.dtype
    # Default MXU precision on the tiny f32 dots may use bf16 passes; allow a
    # loose tolerance.
    assert bool(jnp.allclose(y, y_ref, atol=1e-2, rtol=1e-2)), (
        "mismatch vs reference: max abs err = "
        f"{float(jnp.max(jnp.abs(y - y_ref)))}")

    print("KERNEL_OK")
</pallas_src>

<mosaic_0001>
module attributes {stable_mosaic.version = 11 : i64} {
  func.func @_se_kernel(%arg0: i32, %arg1: memref<2x8x256xf32, #tpu.memory_space<vmem>>, %arg2: memref<8x8xf32, #tpu.memory_space<vmem>>, %arg3: memref<1x8xf32, #tpu.memory_space<vmem>>, %arg4: memref<8x8xf32, #tpu.memory_space<vmem>>, %arg5: memref<2x8x256xf32, #tpu.memory_space<vmem>>) attributes {dimension_semantics = [#tpu.dimension_semantics<parallel>], iteration_bounds = array<i64: 4>, scalar_prefetch = 0 : i64, scratch_operands = 0 : i64, tpu.core_type = #tpu.core_type<tc>, window_params = [{transform_indices = @transform_0, window_bounds = array<i64: 2, 8, 256>}, {pipeline_mode = #tpu.pipeline_mode<synchronous>, transform_indices = @transform_1, window_bounds = array<i64: 8, 8>}, {pipeline_mode = #tpu.pipeline_mode<synchronous>, transform_indices = @transform_2, window_bounds = array<i64: 1, 8>}, {pipeline_mode = #tpu.pipeline_mode<synchronous>, transform_indices = @transform_3, window_bounds = array<i64: 8, 8>}, {transform_indices = @transform_4, window_bounds = array<i64: 2, 8, 256>}]} {
    %c0 = arith.constant 0 : index
    %c0_0 = arith.constant 0 : index
    %c0_1 = arith.constant 0 : index
    %0 = vector.load %arg1[%c0, %c0_0, %c0_1] : memref<2x8x256xf32, #tpu.memory_space<vmem>>, vector<2x8x256xf32>
    %cst = arith.constant dense<0.000000e+00> : vector<2x8xf32>
    %1 = vector.multi_reduction <add>, %0, %cst [2] : vector<2x8x256xf32> to vector<2x8xf32>
    %cst_2 = arith.constant 3.906250e-03 : f32
    %2 = vector.broadcast %cst_2 : f32 to vector<2x8xf32>
    %3 = arith.mulf %1, %2 : vector<2x8xf32>
    %c0_3 = arith.constant 0 : index
    %c0_4 = arith.constant 0 : index
    %4 = vector.load %arg2[%c0_3, %c0_4] : memref<8x8xf32, #tpu.memory_space<vmem>>, vector<8x8xf32>
    %cst_5 = arith.constant dense<0.000000e+00> : vector<2x8xf32>
    %5 = tpu.matmul %3, %4, %cst_5 {dimension_numbers = #tpu.dot_dimension_numbers<[1], [0], [0], [1], [0, 0, 1, 1], [], []>} : vector<2x8xf32>, vector<8x8xf32>, vector<2x8xf32> -> vector<2x8xf32>
    %c0_6 = arith.constant 0 : index
    %c0_7 = arith.constant 0 : index
    %6 = vector.load %arg3[%c0_6, %c0_7] : memref<1x8xf32, #tpu.memory_space<vmem>>, vector<1x8xf32>
    %7 = vector.broadcast %6 : vector<1x8xf32> to vector<2x8xf32>
    %8 = arith.addf %5, %7 : vector<2x8xf32>
    %cst_8 = arith.constant 0.000000e+00 : f32
    %9 = vector.broadcast %cst_8 : f32 to vector<2x8xf32>
    %10 = arith.maximumf %8, %9 : vector<2x8xf32>
    %c0_9 = arith.constant 0 : index
    %c0_10 = arith.constant 0 : index
    %11 = vector.load %arg4[%c0_9, %c0_10] : memref<8x8xf32, #tpu.memory_space<vmem>>, vector<8x8xf32>
    %cst_11 = arith.constant dense<0.000000e+00> : vector<2x8xf32>
    %12 = tpu.matmul %10, %11, %cst_11 {dimension_numbers = #tpu.dot_dimension_numbers<[1], [0], [0], [1], [0, 0, 1, 1], [], []>} : vector<2x8xf32>, vector<8x8xf32>, vector<2x8xf32> -> vector<2x8xf32>
    %cst_12 = arith.constant 3.000000e+00 : f32
    %13 = vector.broadcast %cst_12 : f32 to vector<2x8xf32>
    %14 = arith.addf %12, %13 : vector<2x8xf32>
    %cst_13 = arith.constant 0.000000e+00 : f32
    %cst_14 = arith.constant 6.000000e+00 : f32
    %15 = vector.broadcast %cst_13 : f32 to vector<2x8xf32>
    %16 = arith.maximumf %15, %14 : vector<2x8xf32>
    %17 = vector.broadcast %cst_14 : f32 to vector<2x8xf32>
    %18 = arith.minimumf %17, %16 : vector<2x8xf32>
    %cst_15 = arith.constant 0.166666672 : f32
    %19 = vector.broadcast %cst_15 : f32 to vector<2x8xf32>
    %20 = arith.mulf %18, %19 : vector<2x8xf32>
    %c0_16 = arith.constant 0 : index
    %c0_17 = arith.constant 0 : index
    %c0_18 = arith.constant 0 : index
    %21 = vector.load %arg1[%c0_16, %c0_17, %c0_18] : memref<2x8x256xf32, #tpu.memory_space<vmem>>, vector<2x8x256xf32>
    %22 = vector.shape_cast %20 : vector<2x8xf32> to vector<2x8x1xf32>
    %23 = vector.broadcast %22 : vector<2x8x1xf32> to vector<2x8x256xf32>
    %24 = arith.mulf %21, %23 : vector<2x8x256xf32>
    %c0_19 = arith.constant 0 : index
    %c0_20 = arith.constant 0 : index
    %c0_21 = arith.constant 0 : index
    %25 = vector.load %arg5[%c0_19, %c0_20, %c0_21] : memref<2x8x256xf32, #tpu.memory_space<vmem>>, vector<2x8x256xf32>
    tpu.vector_store %arg5[%c0_19, %c0_20, %c0_21], %24 {strides = array<i32>} : memref<2x8x256xf32, #tpu.memory_space<vmem>>, vector<2x8x256xf32>,
    return
  }
  func.func @transform_0(%arg0: i32) -> (i32, i32, i32) {
    %c0_i32 = arith.constant 0 : i32
    %c0_i32_0 = arith.constant 0 : i32
    %c0_i32_1 = arith.constant 0 : i32
    return %arg0, %c0_i32, %c0_i32_0 : i32, i32, i32
  }
  func.func @transform_1(%arg0: i32) -> (i32, i32) {
    %c0_i32 = arith.constant 0 : i32
    %c0_i32_0 = arith.constant 0 : i32
    %c0_i32_1 = arith.constant 0 : i32
    return %c0_i32, %c0_i32_0 : i32, i32
  }
  func.func @transform_2(%arg0: i32) -> (i32, i32) {
    %c0_i32 = arith.constant 0 : i32
    %c0_i32_0 = arith.constant 0 : i32
    %c0_i32_1 = arith.constant 0 : i32
    return %c0_i32, %c0_i32_0 : i32, i32
  }
  func.func @transform_3(%arg0: i32) -> (i32, i32) {
    %c0_i32 = arith.constant 0 : i32
    %c0_i32_0 = arith.constant 0 : i32
    %c0_i32_1 = arith.constant 0 : i32
    return %c0_i32, %c0_i32_0 : i32, i32
  }
  func.func @transform_4(%arg0: i32) -> (i32, i32, i32) {
    %c0_i32 = arith.constant 0 : i32
    %c0_i32_0 = arith.constant 0 : i32
    %c0_i32_1 = arith.constant 0 : i32
    return %arg0, %c0_i32, %c0_i32_0 : i32, i32, i32
  }
}

</mosaic_0001>

<llo_original>
// kernel: tpu_custom_call.1
$region0: #{tpu_custom_call.1}
  #allocation0 [shape = 'u32[]', space=smem, size = 0x4, offset = 0x4, fixed_abs, tag = 'smem constant byte address 0x4 - core index']
  #allocation1 [shape = 'u32[144,128]{1,0:T(1,128)}', space=vmem, size = 0x12000, scoped, tag = 'internal scratch']
  %s0 = inlined_call_operand.hbm [shape: f32[8,8,256], index: 0, kind: input, shape index: {}]
  %s1 = inlined_call_operand.hbm [shape: f32[8,8], index: 1, kind: input, shape index: {}]
  %s2 = inlined_call_operand.vmem [shape: f32[1,8], index: 2, kind: input, shape index: {}]
  %s3 = inlined_call_operand.vmem [shape: f32[8,8], index: 3, kind: input, shape index: {}]
  %s4 = inlined_call_operand.hbm [shape: f32[8,8,256], index: 4, kind: output, shape index: {}]
  %s5 = sld [smem:[#allocation0]]
  $region57: #{tpu_custom_call.1} parent=0
    _
  %s7 = ssub.s32 1, %s5
  %s8 = scalar_select 0, %s7, %s5
  $region1: #{tpu_custom_call.1} parent=0
    #allocation2 [shape = 'u8[32768]{0}', space=vmem, size = 0x8000, scoped, tag = 'input window, operand 0']
    #allocation3 [shape = 's32[2]{0}', space=sflag, size = 0x8, scoped, tag = 'scoped memory for tpu_custom_call.1']
    #allocation4 [shape = 's32[2]{0}', space=sflag, size = 0x8, scoped, tag = 'scoped memory for tpu_custom_call.1']
    #allocation5 [shape = 'u8[4096]{0}', space=vmem, size = 0x1000, scoped, tag = 'input window, operand 1, single buffered']
    #allocation6 [shape = 's32[1]{0}', space=sflag, size = 0x4, scoped, tag = 'scoped memory for tpu_custom_call.1']
    #allocation7 [shape = 'u8[32768]{0}', space=vmem, size = 0x8000, scoped, tag = 'output window, operand 0']
    %9 = vsyncpa [#allocation3], 0
    %s10 = scalar_lea.sflag [#allocation3], 1
    %11 = vsyncpa %s10, 0
    %12 = vsyncpa [#allocation6], 0
    %13 = vsyncpa [#allocation4], 0
    %s14 = scalar_lea.sflag [#allocation4], 1
    %15 = vsyncpa %s14, 0
    loop: start=0, step=1, limit=6
    $region2: #{tpu_custom_call.1} parent=1 // loop_pre_header
      _
    $region3: #{tpu_custom_call.1} parent=1 // loop_header
      %s17 = sphi 0, %s21
      %p18 = scmp.ge.s32.totalorder %s17, 6
      %s27 = sphi 0, %s29
      %s30 = sphi 0, %s27
      %s31 = sphi 0, %s30
      %s47 = sphi 0, %s31
      %s51 = sphi 0, %s51
      %s53 = sphi 0, %s51
      %s54 = sphi 0, %s53
      %s68 = sphi 0, %s54
      %s72 = sphi 0, %s72
      %s74 = sphi 0, %s72
      %s75 = sphi 0, %s74
      %s89 = sphi 0, %s75
      %s93 = sphi 0, %s93
      %s95 = sphi 0, %s93
      %s96 = sphi 0, %s95
      %s110 = sphi 0, %s96
      %s116 = sphi 0, %s118
      %s119 = sphi 0, %s116
      %s120 = sphi 0, %s119
      %s136 = sphi 0, %s120
    $region4: #{tpu_custom_call.1} parent=1 // loop_header_branch
      %20 = sbr.rel (%p18) target = $region8
    $region5: #{tpu_custom_call.1} parent=1 // loop_body
      %s22 = ssub.s32 %s17, 1
      %s23 = ssub.s32 %s17, 2
      %s24 = sadd.s32 %s17, 1
      %s25 = ssub.s32 %s17, %s24
      %p26 = scmp.eq.s32.totalorder %s25, 0
      %s28 = sadd.s32 %s27, 1
      %s29 = scalar_select %p26, %s27, %s28
      %p32 = pneg %p26
      %p33 = scmp.eq.s32.totalorder %s17, 3
      %p34 = por %p32, %p33
      %p35 = scmp.ne.s32.totalorder %s27, %s30
      %p36 = scmp.eq.s32.totalorder %s17, 0
      %p37 = por %p35, %p36
      %p38 = scmp.ne.s32.totalorder %s27, %s30
      %p39 = scmp.eq.s32.totalorder %s22, 3
      %p40 = por %p38, %p39
      %p41 = scmp.ne.s32.totalorder %s30, %s31
      %p42 = scmp.eq.s32.totalorder %s22, 0
      %p43 = por %p41, %p42
      %p44 = scmp.ne.s32.totalorder %s30, %s31
      %p45 = scmp.eq.s32.totalorder %s23, 3
      %p46 = por %p44, %p45
      %p48 = scmp.ne.s32.totalorder %s31, %s47
      %p49 = scmp.eq.s32.totalorder %s23, 0
      %p50 = por %p48, %p49
      %s52 = sadd.s32 %s51, 1
      %p55 = scmp.eq.s32.totalorder %s17, 3
      %p56 = scmp.ne.s32.totalorder %s51, %s53
      %p57 = scmp.eq.s32.totalorder %s17, 0
      %p58 = por %p56, %p57
      %p59 = scmp.ne.s32.totalorder %s51, %s53
      %p60 = scmp.eq.s32.totalorder %s22, 3
      %p61 = por %p59, %p60
      %p62 = scmp.ne.s32.totalorder %s53, %s54
      %p63 = scmp.eq.s32.totalorder %s22, 0
      %p64 = por %p62, %p63
      %p65 = scmp.ne.s32.totalorder %s53, %s54
      %p66 = scmp.eq.s32.totalorder %s23, 3
      %p67 = por %p65, %p66
      %p69 = scmp.ne.s32.totalorder %s54, %s68
      %p70 = scmp.eq.s32.totalorder %s23, 0
      %p71 = por %p69, %p70
      %s73 = sadd.s32 %s72, 1
      %p76 = scmp.eq.s32.totalorder %s17, 3
      %p77 = scmp.ne.s32.totalorder %s72, %s74
      %p78 = scmp.eq.s32.totalorder %s17, 0
      %p79 = por %p77, %p78
      %p80 = scmp.ne.s32.totalorder %s72, %s74
      %p81 = scmp.eq.s32.totalorder %s22, 3
      %p82 = por %p80, %p81
      %p83 = scmp.ne.s32.totalorder %s74, %s75
      %p84 = scmp.eq.s32.totalorder %s22, 0
      %p85 = por %p83, %p84
      %p86 = scmp.ne.s32.totalorder %s74, %s75
      %p87 = scmp.eq.s32.totalorder %s23, 3
      %p88 = por %p86, %p87
      %p90 = scmp.ne.s32.totalorder %s75, %s89
      %p91 = scmp.eq.s32.totalorder %s23, 0
      %p92 = por %p90, %p91
      %s94 = sadd.s32 %s93, 1
      %p97 = scmp.eq.s32.totalorder %s17, 3
      %p98 = scmp.ne.s32.totalorder %s93, %s95
      %p99 = scmp.eq.s32.totalorder %s17, 0
      %p100 = por %p98, %p99
      %p101 = scmp.ne.s32.totalorder %s93, %s95
      %p102 = scmp.eq.s32.totalorder %s22, 3
      %p103 = por %p101, %p102
      %p104 = scmp.ne.s32.totalorder %s95, %s96
      %p105 = scmp.eq.s32.totalorder %s22, 0
      %p106 = por %p104, %p105
      %p107 = scmp.ne.s32.totalorder %s95, %s96
      %p108 = scmp.eq.s32.totalorder %s23, 3
      %p109 = por %p107, %p108
      %p111 = scmp.ne.s32.totalorder %s96, %s110
      %p112 = scmp.eq.s32.totalorder %s23, 0
      %p113 = por %p111, %p112
      %s114 = ssub.s32 %s17, %s24
      %p115 = scmp.eq.s32.totalorder %s114, 0
      %s117 = sadd.s32 %s116, 1
      %s118 = scalar_select %p115, %s116, %s117
      %p121 = pneg %p115
      %p122 = scmp.eq.s32.totalorder %s17, 3
      %p123 = por %p121, %p122
      %p124 = scmp.ne.s32.totalorder %s116, %s119
      %p125 = scmp.eq.s32.totalorder %s17, 0
      %p126 = por %p124, %p125
      %p127 = scmp.ne.s32.totalorder %s116, %s119
      %p128 = scmp.eq.s32.totalorder %s22, 3
      %p129 = por %p127, %p128
      %p130 = scmp.ne.s32.totalorder %s119, %s120
      %p131 = scmp.eq.s32.totalorder %s22, 0
      %p132 = por %p130, %p131
      %p133 = scmp.ne.s32.totalorder %s119, %s120
      %p134 = scmp.eq.s32.totalorder %s23, 3
      %p135 = por %p133, %p134
      %p137 = scmp.ne.s32.totalorder %s120, %s136
      %p138 = scmp.eq.s32.totalorder %s23, 0
      %p139 = por %p137, %p138
      %p140 = scmp.le.s32.totalorder 1, %s17
      %p141 = scmp.lt.s32.totalorder %s17, 5
      %p142 = pnand %p140, %p141
      %p143 = pneg %p142
      // Predicated region
      $region9: #{tpu_custom_call.1} parent=5 // pred_check
        _
      $region10: #{tpu_custom_call.1} parent=5 // pred_check_branch
        %145 = sbr.rel (%p142) target = $region12
      $region11: #{tpu_custom_call.1} parent=5 // pred_region
        %s146 = ssub.s32 %s17, 1
        // Predicated region
        $region13: #{tpu_custom_call.1} parent=11 // pred_check
          %p147 = pneg %p64
        $region14: #{tpu_custom_call.1} parent=11 // pred_check_branch
          %149 = sbr.rel (%p147) target = $region16
        $region15: #{tpu_custom_call.1} parent=11 // pred_region
          %s151 = ssub.s32 128, 128
          %152 = vsyncadd [#allocation6], %s151
          %s154 = sshll.u32 [#allocation5], 4
          %s155 = int_to_ptr.vmem [resolvable:$true] %s154
          %157 = dma.hbm_to_vmem [thread:$0]  %s1, 128, %s155, [#allocation6]
        $region16: #{tpu_custom_call.1} parent=11 // pred_fallthru
          _
        // Predicated region
        $region17: #{tpu_custom_call.1} parent=11 // pred_check
          %p158 = pneg %p85
        $region18: #{tpu_custom_call.1} parent=11 // pred_check_branch
          %160 = sbr.rel (%p158) target = $region20
        $region19: #{tpu_custom_call.1} parent=11 // pred_region
          _
        $region20: #{tpu_custom_call.1} parent=11 // pred_fallthru
          _
        // Predicated region
        $region21: #{tpu_custom_call.1} parent=11 // pred_check
          %p161 = pneg %p106
        $region22: #{tpu_custom_call.1} parent=11 // pred_check_branch
          %163 = sbr.rel (%p161) target = $region24
        $region23: #{tpu_custom_call.1} parent=11 // pred_region
          _
        $region24: #{tpu_custom_call.1} parent=11 // pred_fallthru
          _
      $region12: #{tpu_custom_call.1} parent=5 // pred_fallthru
        _
      %p164 = scmp.lt.s32.totalorder %s17, 4
      // Predicated region
      $region25: #{tpu_custom_call.1} parent=5 // pred_check
        %p165 = pneg %p164
      $region26: #{tpu_custom_call.1} parent=5 // pred_check_branch
        %167 = sbr.rel (%p165) target = $region28
      $region27: #{tpu_custom_call.1} parent=5 // pred_region
        // Predicated region
        $region29: #{tpu_custom_call.1} parent=27 // pred_check
          %p168 = pneg %p37
        $region30: #{tpu_custom_call.1} parent=27 // pred_check_branch
          %170 = sbr.rel (%p168) target = $region32
        $region31: #{tpu_custom_call.1} parent=27 // pred_region
          %s171 = sand.u32 %s27, 1
          %s172 = scalar_lea.sflag [#allocation3], %s171
          %s173 = sand.u32 %s27, 1
          %s174 = smul.addr %s173, 32
          %s175 = scalar_lea.vmem [#allocation2], %s174
          %s176 = smul.u32 2, %s17
          %s178 = ssub.s32 512, 512
          %179 = vsyncadd %s172, %s178
          %s180 = smul.addr %s176, 2
          %s181 = smul.addr %s180, 128
          %s182 = scalar_lea.hbm %s0, %s181
          %s183 = sshll.u32 %s175, 4
          %s184 = int_to_ptr.vmem [resolvable:$true] %s183
          %189 = dma.hbm_to_vmem [thread:$0]  %s182, 512, %s184, %s172, 256, 256, 16
        $region32: #{tpu_custom_call.1} parent=27 // pred_fallthru
          _
      $region28: #{tpu_custom_call.1} parent=5 // pred_fallthru
        _
      %p190 = scmp.le.s32.totalorder 1, %s17
      %p191 = scmp.lt.s32.totalorder %s17, 5
      %p192 = pnand %p190, %p191
      %p193 = pneg %p192
      // Predicated region
      $region33: #{tpu_custom_call.1} parent=5 // pred_check
        _
      $region34: #{tpu_custom_call.1} parent=5 // pred_check_branch
        %195 = sbr.rel (%p192) target = $region36
      $region35: #{tpu_custom_call.1} parent=5 // pred_region
        %s196 = ssub.s32 %s17, 1
        %s197 = sand.u32 %s30, 1
        %s198 = scalar_lea.sflag [#allocation3], %s197
        %s199 = sand.u32 %s30, 1
        %s200 = smul.addr %s199, 32
        %s201 = scalar_lea.vmem [#allocation2], %s200
        // Predicated region
        $region37: #{tpu_custom_call.1} parent=35 // pred_check
          %p202 = pneg %p43
        $region38: #{tpu_custom_call.1} parent=35 // pred_check_branch
          %204 = sbr.rel (%p202) target = $region40
        $region39: #{tpu_custom_call.1} parent=35 // pred_region
          %205 = dma.done %s198, 512
        $region40: #{tpu_custom_call.1} parent=35 // pred_fallthru
          _
        // Predicated region
        $region41: #{tpu_custom_call.1} parent=35 // pred_check
          %p206 = pneg %p64
        $region42: #{tpu_custom_call.1} parent=35 // pred_check_branch
          %208 = sbr.rel (%p206) target = $region44
        $region43: #{tpu_custom_call.1} parent=35 // pred_region
          %209 = dma.done [#allocation6], 128
        $region44: #{tpu_custom_call.1} parent=35 // pred_fallthru
          _
        %s210 = sand.u32 %s30, 1
        %s211 = scalar_lea.sflag [#allocation3], %s210
        %s212 = sand.u32 %s30, 1
        %s213 = smul.addr %s212, 32
        %s214 = scalar_lea.vmem [#allocation2], %s213
        %p215 = pneg %p43
        %p216 = pneg %p40
        %p217 = pneg %p64
        %p218 = pneg %p61
        %p219 = pneg %p85
        %p220 = pneg %p82
        %p221 = pneg %p106
        %p222 = pneg %p103
        %p223 = pneg %p132
        %p224 = pneg %p129
        %s225 = sand.u32 %s119, 1
        %s226 = scalar_lea.sflag [#allocation4], %s225
        %s227 = sand.u32 %s119, 1
        %s228 = smul.addr %s227, 32
        %s229 = scalar_lea.vmem [#allocation7], %s228
        %s230 = smul.u32 2, %s22
        %s231 = smul.u32 2, %s22
        %v232 = vld [vmem:[%s201] sm:$0xff]
        %v233 = vld [vmem:[%s201 + $0x8] sm:$0xff]
        %v234 = vld [vmem:[%s201 + $0x10] sm:$0xff]
        %v235 = vld [vmem:[%s201 + $0x18] sm:$0xff]
        %v236 = vadd.f32 %v232, %v233
        %237 = vadd.xlane.f32.xlu0 %v236
        %v238 = vpop.xlane.xlu0 %237
        %v239 = vadd.f32 %v234, %v235
        %240 = vadd.xlane.f32.xlu0 %v239
        %v241 = vpop.xlane.xlu0 %240
        %v242 = vmul.f32 %v238, 0.00390625
        %v243 = vmul.f32 %v241, 0.00390625
        %v244 = vld [vmem:[#allocation5] sm:$0xff]
        %v245 = vld [vmem:[%s2] sm:$0x1]
        %v247 = vlaneseq
        %v248 = vshrl.u32 %v247, 7
        %v249 = vsub.s32 0, %v248
        %v250 = vrot.slane %v245, %v249
        %v254 = vlaneseq
        %v255 = vand.u32 %v254, 127
        %v256 = vlaneseq
        %v257 = vshrl.u32 %v256, 7
        %v258 = vsub.s32 %v255, %v257
        %v259 = vrot.slane %v242, %v258
        %v260 = vlaneseq
        %v261 = vshrl.u32 %v260, 7
        %v262 = vsub.s32 %v255, %v261
        %v263 = vrot.slane %v243, %v262
        %vm264 = vcmask 1041409
        %v265 = vsel %vm264, %v263, %v259
        %vm266 = vcmask 64512
        %v267 = vsel %vm266, %v265, 0
        %269 = vmatprep.subr.mxu0 0.0
        %270 = vmatpush1.msra.mxu0 %v244
        %271 = vmatprep.subr.mxu0 0.0
        %272 = vmatpush1.msra.mxu0 0.0
        %273 = vmatprep.subr.mxu0 0.0
        %274 = vmatpush1.msra.mxu0 0.0
        %275 = vmatprep.subr.mxu0 0.0
        %276 = vmatpush1.msra.mxu0 0.0
        %277 = vmatprep.subr.mxu0 0.0
        %278 = vmatpush1.msra.mxu0 0.0
        %279 = vmatprep.subr.mxu0 0.0
        %280 = vmatpush1.msra.mxu0 0.0
        %281 = vmatprep.subr.mxu0 0.0
        %282 = vmatpush1.msra.mxu0 0.0
        %283 = vmatprep.subr.mxu0 0.0
        %284 = vmatpush1.msra.mxu0 0.0
        %285 = vmatprep.subr.mxu0 0.0
        %286 = vmatpush1.msra.mxu0 0.0
        %287 = vmatprep.subr.mxu0 0.0
        %288 = vmatpush1.msra.mxu0 0.0
        %289 = vmatprep.subr.mxu0 0.0
        %290 = vmatpush1.msra.mxu0 0.0
        %291 = vmatprep.subr.mxu0 0.0
        %292 = vmatpush1.msra.mxu0 0.0
        %293 = vmatprep.subr.mxu0 0.0
        %294 = vmatpush1.msra.mxu0 0.0
        %295 = vmatprep.subr.mxu0 0.0
        %296 = vmatpush1.msra.mxu0 0.0
        %297 = vmatprep.subr.mxu0 0.0
        %298 = vmatpush1.msra.mxu0 0.0
        %299 = vmatprep.subr.mxu0 0.0
        %300 = vmatpush1.msra.mxu0 0.0
        %301 = vmatprep.subr.mxu0 0.0
        %302 = vmatpush1.msra.mxu0 0.0
        %303 = vmatprep.subr.mxu0 0.0
        %304 = vmatpush1.msra.mxu0 0.0
        %305 = vmatprep.subr.mxu0 0.0
        %306 = vmatpush1.msra.mxu0 0.0
        %307 = vmatprep.subr.mxu0 0.0
        %308 = vmatpush1.msra.mxu0 0.0
        %309 = vmatprep.subr.mxu0 0.0
        %310 = vmatpush1.msra.mxu0 0.0
        %311 = vmatprep.subr.mxu0 0.0
        %312 = vmatpush1.msra.mxu0 0.0
        %313 = vmatprep.subr.mxu0 0.0
        %314 = vmatpush1.msra.mxu0 0.0
        %315 = vmatprep.subr.mxu0 0.0
        %316 = vmatpush1.msra.mxu0 0.0
        %317 = vmatprep.subr.mxu0 0.0
        %318 = vmatpush1.msra.mxu0 0.0
        %319 = vmatprep.subr.mxu0 0.0
        %320 = vmatpush1.msra.mxu0 0.0
        %321 = vmatprep.subr.mxu0 0.0
        %322 = vmatpush1.msra.mxu0 0.0
        %323 = vmatprep.subr.mxu0 0.0
        %324 = vmatpush1.msra.mxu0 0.0
        %325 = vmatprep.subr.mxu0 0.0
        %326 = vmatpush1.msra.mxu0 0.0
        %327 = vmatprep.subr.mxu0 0.0
        %328 = vmatpush1.msra.mxu0 0.0
        %329 = vmatprep.subr.mxu0 0.0
        %330 = vmatpush1.msra.mxu0 0.0
        %331 = vmatprep.subr.mxu0 0.0
        %332 = vmatpush1.msra.mxu0 0.0
        %333 = vmatprep.mubr.f32.mxu0 0.0
        %334 = vmatmul.mubr.f32.gmra.mrb[0].mxu0 %v267
        %v335 = vpop.f32.mrb[0].mxu0
        %v336 = vadd.f32 %v250, %v335
        %v337 = vpop.f32.mrb[0].mxu0
        %338 = vdwg.mxu0
        %v339 = vmax.f32 %v336, 0.0
        %v340 = vld [vmem:[%s3] sm:$0xff]
        %v342 = vsel %vm266, %v339, 0
        %344 = vmatprep.subr.mxu0 0.0
        %345 = vmatpush1.msra.mxu0 %v340
        %346 = vmatprep.subr.mxu0 0.0
        %347 = vmatpush1.msra.mxu0 0.0
        %348 = vmatprep.subr.mxu0 0.0
        %349 = vmatpush1.msra.mxu0 0.0
        %350 = vmatprep.subr.mxu0 0.0
        %351 = vmatpush1.msra.mxu0 0.0
        %352 = vmatprep.subr.mxu0 0.0
        %353 = vmatpush1.msra.mxu0 0.0
        %354 = vmatprep.subr.mxu0 0.0
        %355 = vmatpush1.msra.mxu0 0.0
        %356 = vmatprep.subr.mxu0 0.0
        %357 = vmatpush1.msra.mxu0 0.0
        %358 = vmatprep.subr.mxu0 0.0
        %359 = vmatpush1.msra.mxu0 0.0
        %360 = vmatprep.subr.mxu0 0.0
        %361 = vmatpush1.msra.mxu0 0.0
        %362 = vmatprep.subr.mxu0 0.0
        %363 = vmatpush1.msra.mxu0 0.0
        %364 = vmatprep.subr.mxu0 0.0
        %365 = vmatpush1.msra.mxu0 0.0
        %366 = vmatprep.subr.mxu0 0.0
        %367 = vmatpush1.msra.mxu0 0.0
        %368 = vmatprep.subr.mxu0 0.0
        %369 = vmatpush1.msra.mxu0 0.0
        %370 = vmatprep.subr.mxu0 0.0
        %371 = vmatpush1.msra.mxu0 0.0
        %372 = vmatprep.subr.mxu0 0.0
        %373 = vmatpush1.msra.mxu0 0.0
        %374 = vmatprep.subr.mxu0 0.0
        %375 = vmatpush1.msra.mxu0 0.0
        %376 = vmatprep.subr.mxu0 0.0
        %377 = vmatpush1.msra.mxu0 0.0
        %378 = vmatprep.subr.mxu0 0.0
        %379 = vmatpush1.msra.mxu0 0.0
        %380 = vmatprep.subr.mxu0 0.0
        %381 = vmatpush1.msra.mxu0 0.0
        %382 = vmatprep.subr.mxu0 0.0
        %383 = vmatpush1.msra.mxu0 0.0
        %384 = vmatprep.subr.mxu0 0.0
        %385 = vmatpush1.msra.mxu0 0.0
        %386 = vmatprep.subr.mxu0 0.0
        %387 = vmatpush1.msra.mxu0 0.0
        %388 = vmatprep.subr.mxu0 0.0
        %389 = vmatpush1.msra.mxu0 0.0
        %390 = vmatprep.subr.mxu0 0.0
        %391 = vmatpush1.msra.mxu0 0.0
        %392 = vmatprep.subr.mxu0 0.0
        %393 = vmatpush1.msra.mxu0 0.0
        %394 = vmatprep.subr.mxu0 0.0
        %395 = vmatpush1.msra.mxu0 0.0
        %396 = vmatprep.subr.mxu0 0.0
        %397 = vmatpush1.msra.mxu0 0.0
        %398 = vmatprep.subr.mxu0 0.0
        %399 = vmatpush1.msra.mxu0 0.0
        %400 = vmatprep.subr.mxu0 0.0
        %401 = vmatpush1.msra.mxu0 0.0
        %402 = vmatprep.subr.mxu0 0.0
        %403 = vmatpush1.msra.mxu0 0.0
        %404 = vmatprep.subr.mxu0 0.0
        %405 = vmatpush1.msra.mxu0 0.0
        %406 = vmatprep.subr.mxu0 0.0
        %407 = vmatpush1.msra.mxu0 0.0
        %408 = vmatprep.mubr.f32.mxu0 0.0
        %409 = vmatmul.mubr.f32.gmra.mrb[0].mxu0 %v342
        %v410 = vpop.f32.mrb[0].mxu0
        %v411 = vadd.f32 3.0, %v410
        %v412 = vpop.f32.mrb[0].mxu0
        %413 = vdwg.mxu0
        %v414 = vmax.f32 %v411, 0.0
        %v415 = vmin.f32 %v414, 6.0
        %v416 = vmul.f32 %v415, 0.16666667
        %v417 = vlaneseq
        %v418 = vshrl.u32 %v417, 7
        %v419 = vsub.s32 0, %v418
        %v420 = vrot.slane %v416, %v419
        %422 = vbcast.lane.b32.xlu0 %v420, 256
        %v423 = vpop.permute.xlu0 %422
        %v424 = vlaneseq
        %v425 = vshrl.u32 %v424, 7
        %v426 = vsub.s32 1, %v425
        %v427 = vrot.slane %v416, %v426
        %429 = vbcast.lane.b32.xlu0 %v427, 256
        %v430 = vpop.permute.xlu0 %429
        %v431 = vmul.f32 %v232, %v423
        %v432 = vmul.f32 %v233, %v423
        %v433 = vmul.f32 %v234, %v430
        %v434 = vmul.f32 %v235, %v430
        %435 = vst [vmem:[%s229] sm:$0xff] %v431
        %436 = vst [vmem:[%s229 + $0x8] sm:$0xff] %v432
        %437 = vst [vmem:[%s229 + $0x10] sm:$0xff] %v433
        %438 = vst [vmem:[%s229 + $0x18] sm:$0xff] %v434
        %s439 = sand.u32 %s119, 1
        %s440 = scalar_lea.sflag [#allocation4], %s439
        %s441 = sand.u32 %s119, 1
        %s442 = smul.addr %s441, 32
        %s443 = scalar_lea.vmem [#allocation7], %s442
        // Predicated region
        $region45: #{tpu_custom_call.1} parent=35 // pred_check
          %p444 = pneg %p129
        $region46: #{tpu_custom_call.1} parent=35 // pred_check_branch
          %446 = sbr.rel (%p444) target = $region48
        $region47: #{tpu_custom_call.1} parent=35 // pred_region
          %s447 = smul.u32 2, %s22
          %s449 = ssub.s32 512, 512
          %450 = vsyncadd %s440, %s449
          %s451 = smul.addr %s447, 2
          %s452 = smul.addr %s451, 128
          %s453 = scalar_lea.hbm %s4, %s452
          %s454 = sshll.u32 %s443, 4
          %s455 = int_to_ptr.vmem [resolvable:$true] %s454
          %460 = dma.vmem_to_hbm [thread:$0]  %s455, 512, %s453, %s440, 256, 256, 16
        $region48: #{tpu_custom_call.1} parent=35 // pred_fallthru
          _
      $region36: #{tpu_custom_call.1} parent=5 // pred_fallthru
        _
      %p461 = scmp.le.s32.totalorder 2, %s17
      // Predicated region
      $region49: #{tpu_custom_call.1} parent=5 // pred_check
        %p462 = pneg %p461
      $region50: #{tpu_custom_call.1} parent=5 // pred_check_branch
        %464 = sbr.rel (%p462) target = $region52
      $region51: #{tpu_custom_call.1} parent=5 // pred_region
        %s465 = ssub.s32 %s17, 2
        // Predicated region
        $region53: #{tpu_custom_call.1} parent=51 // pred_check
          %p466 = pneg %p135
        $region54: #{tpu_custom_call.1} parent=51 // pred_check_branch
          %468 = sbr.rel (%p466) target = $region56
        $region55: #{tpu_custom_call.1} parent=51 // pred_region
          %s469 = sand.u32 %s120, 1
          %s470 = scalar_lea.sflag [#allocation4], %s469
          %s471 = sand.u32 %s120, 1
          %s472 = smul.addr %s471, 32
          %s473 = scalar_lea.vmem [#allocation7], %s472
          %474 = dma.done %s470, 512
        $region56: #{tpu_custom_call.1} parent=51 // pred_fallthru
          _
      $region52: #{tpu_custom_call.1} parent=5 // pred_fallthru
        _
    $region6: #{tpu_custom_call.1} parent=1 // loop_footer
      %s21 = sadd.s32 1, %s17
    $region7: #{tpu_custom_call.1} parent=1 // loop_footer_branch
      %16 = sbr.rel target = $region3
    $region8: #{tpu_custom_call.1} parent=1 // loop_exit
      _
    %475 = vsyncpa [#allocation3], 1
    %s476 = scalar_lea.sflag [#allocation3], 1
    %477 = vsyncpa %s476, 1
    %478 = vsyncpa [#allocation6], 1
    %479 = vsyncpa [#allocation4], 1
    %s480 = scalar_lea.sflag [#allocation4], 1
    %481 = vsyncpa %s480, 1

</llo_original>
